<compile_context>
chip_gen: v7x
topology: tpu7x:2x2x1
jax: 0.10.0
libtpu: 0.0.40
codegen_flags: <defaults>
</compile_context>

<pallas_src>
import math

import jax
import jax.numpy as jnp
from jax.experimental import pallas as pl
from jax.experimental.pallas import tpu as pltpu


def _local_attn_kernel(w_ref, rgb_ref, t_ref, o_rgb_ref, o_t_ref):
    # w_ref: (3,) f32 in SMEM (conv taps pre-scaled by 1/HW, scalar-prefetched)
    # rgb_ref / t_ref / o_*_ref: (1, C, HW) VMEM blocks (one batch element).
    C = rgb_ref.shape[1]
    f32 = jnp.float32

    # --- per-channel GAP (as sums; 1/HW is folded into the conv weights) ----
    # keepdims keeps channels on the sublane axis -> no relayout of the result.
    u_rgb = jnp.sum(rgb_ref[...], axis=-1, keepdims=True, dtype=f32)[0]   # (C, 1)
    u_t   = jnp.sum(t_ref[...],   axis=-1, keepdims=True, dtype=f32)[0]   # (C, 1)

    w0 = w_ref[0]
    w1 = w_ref[1]
    w2 = w_ref[2]

    # --- 3-tap conv over the (virtually) interleaved channel axis -----------
    # Masks: rows k = source channel (sublanes), cols c = destination (lanes).
    k_idx = jax.lax.broadcasted_iota(jnp.int32, (C, C), 0)
    c_idx = jax.lax.broadcasted_iota(jnp.int32, (C, C), 1)
    diag = k_idx == c_idx
    t_to_rgb = jnp.where(k_idx == c_idx - 1, w0, 0.0) + jnp.where(diag, w2, 0.0)
    rgb_to_t = jnp.where(diag, w0, 0.0) + jnp.where(k_idx == c_idx + 1, w2, 0.0)
    self_tap = jnp.where(diag, w1, 0.0)

    # (C,1) * (C,C) lane-broadcast products, reduced over the source (sublane)
    # axis -> (1, C) rows.  Zero padding at the channel ends falls out of the
    # never-matching masks (k == -1, k == C).
    y_rgb = jnp.sum(u_rgb * self_tap + u_t * t_to_rgb, axis=0, keepdims=True)
    y_t   = jnp.sum(u_rgb * rgb_to_t + u_t * self_tap, axis=0, keepdims=True)

    s_rgb_row = jax.nn.sigmoid(y_rgb)            # (1, C)
    s_t_row   = jax.nn.sigmoid(y_t)              # (1, C)

    # Row (1,C) -> column (C,1) via one more masked reduce (tiny transpose so
    # the scale lines up with the channel/sublane axis of the data blocks).
    eye = jnp.where(diag, 1.0, 0.0)
    s_rgb = jnp.sum(s_rgb_row * eye, axis=1, keepdims=True)   # (C, 1)
    s_t   = jnp.sum(s_t_row * eye, axis=1, keepdims=True)     # (C, 1)

    # --- channel-wise rescale ------------------------------------------------
    # Re-read the refs (two independent loads bound live ranges; the big tile
    # is never bound to one long-lived value) and cast only the scale vector.
    o_rgb_ref[...] = rgb_ref[...] * s_rgb[None].astype(o_rgb_ref.dtype)
    o_t_ref[...]   = t_ref[...]   * s_t[None].astype(o_t_ref.dtype)


def local_attention_block(rgb, t, conv_w):
    """rgb, t: (B, C, H, W) float32 (NCHW, as in the PyTorch module).
    conv_w: (1, 1, 3) Conv1d weight (out=1, in=1, k=3), no bias."""
    B, C, H, W = rgb.shape
    HW = H * W

    # Fold the GAP's 1/HW into the conv taps; the kernel then only needs sums.
    w_scaled = (conv_w.reshape(3) / float(HW)).astype(jnp.float32)

    # Zero-copy reshapes (last two dims are contiguous): lane dim = HW (256
    # here, a multiple of 128, so stores stay lane-dense / unmasked).
    rgb2 = rgb.reshape(B, C, HW)
    t2 = t.reshape(B, C, HW)

    block = (1, C, HW)

    # Raise scoped VMEM only if the per-batch blocks actually need it
    # (2 inputs + 2 outputs, double-buffered).
    blk_bytes = C * HW * rgb.dtype.itemsize
    est = 2 * 4 * blk_bytes + (1 << 20)
    vmem_limit = min(est, 100 << 20) if est > (32 << 20) else None
    # TODO(synk): for very large C*HW (v7x: 64 MiB VMEM) or B == 1 on v7x, add
    # an HW-tile grid axis with a two-pass sum-then-scale; unnecessary here.

    rgb_o, t_o = pl.pallas_call(
        _local_attn_kernel,
        out_shape=(jax.ShapeDtypeStruct((B, C, HW), rgb.dtype),
                   jax.ShapeDtypeStruct((B, C, HW), t.dtype)),
        grid_spec=pltpu.PrefetchScalarGridSpec(
            num_scalar_prefetch=1,          # conv taps -> SMEM
            grid=(B,),
            in_specs=[pl.BlockSpec(block, lambda b, w: (b, 0, 0)),
                      pl.BlockSpec(block, lambda b, w: (b, 0, 0))],
            out_specs=(pl.BlockSpec(block, lambda b, w: (b, 0, 0)),
                       pl.BlockSpec(block, lambda b, w: (b, 0, 0)))),
        compiler_params=pltpu.CompilerParams(
            dimension_semantics=("parallel",),
            vmem_limit_bytes=vmem_limit),
    )(w_scaled, rgb2, t2)

    return rgb_o.reshape(B, C, H, W), t_o.reshape(B, C, H, W)


def _reference(rgb, t, conv_w):
    """Pure-JAX reference mirroring the PyTorch forward."""
    B, C, H, W = rgb.shape
    C2 = 2 * C
    union = jnp.stack([rgb, t], axis=2).reshape(B, C2, H, W)
    m = jnp.mean(union, axis=(2, 3))                         # (B, 2C)
    mp = jnp.pad(m, ((0, 0), (1, 1)))
    w = conv_w.reshape(3)
    y = w[0] * mp[:, :-2] + w[1] * mp[:, 1:-1] + w[2] * mp[:, 2:]
    s = jax.nn.sigmoid(y)
    union = union * s[:, :, None, None]
    u = union.reshape(B, C, 2, H, W)
    return u[:, :, 0], u[:, :, 1]


if __name__ == "__main__":
    key = jax.random.PRNGKey(0)
    k_rgb, k_t, k_w = jax.random.split(key, 3)

    B, C, H, W = 2, 4, 16, 16
    rgb = jax.random.normal(k_rgb, (B, C, H, W), dtype=jnp.float32)
    t = jax.random.normal(k_t, (B, C, H, W), dtype=jnp.float32)

    # Conv1d(1, 1, 3, bias=False) weight, kaiming_normal_(mode='fan_out'):
    # fan_out = out_channels * kernel_size = 3, std = sqrt(2 / fan_out).
    conv_w = jax.random.normal(k_w, (1, 1, 3), dtype=jnp.float32) * math.sqrt(2.0 / 3.0)

    rgb_out, t_out = local_attention_block(rgb, t, conv_w)
    jax.block_until_ready((rgb_out, t_out))

    rgb_ref, t_ref = _reference(rgb, t, conv_w)
    assert jnp.allclose(rgb_out, rgb_ref, atol=1e-5, rtol=1e-5)
    assert jnp.allclose(t_out, t_ref, atol=1e-5, rtol=1e-5)

    print("KERNEL_OK")
</pallas_src>

<mosaic_0001>
module attributes {stable_mosaic.version = 11 : i64} {
  func.func @_local_attn_kernel(%arg0: i32, %arg1: memref<3xf32, #tpu.memory_space<smem>>, %arg2: memref<1x4x256xf32, #tpu.memory_space<vmem>>, %arg3: memref<1x4x256xf32, #tpu.memory_space<vmem>>, %arg4: memref<1x4x256xf32, #tpu.memory_space<vmem>>, %arg5: memref<1x4x256xf32, #tpu.memory_space<vmem>>) attributes {dimension_semantics = [#tpu.dimension_semantics<parallel>], iteration_bounds = array<i64: 2>, scalar_prefetch = 1 : i64, scratch_operands = 0 : i64, tpu.core_type = #tpu.core_type<tc>, window_params = [{transform_indices = @transform_0, window_bounds = array<i64: 1, 4, 256>}, {transform_indices = @transform_1, window_bounds = array<i64: 1, 4, 256>}, {transform_indices = @transform_2, window_bounds = array<i64: 1, 4, 256>}, {transform_indices = @transform_3, window_bounds = array<i64: 1, 4, 256>}]} {
    %c0 = arith.constant 0 : index
    %c0_0 = arith.constant 0 : index
    %c0_1 = arith.constant 0 : index
    %0 = vector.load %arg2[%c0, %c0_0, %c0_1] : memref<1x4x256xf32, #tpu.memory_space<vmem>>, vector<1x4x256xf32>
    %cst = arith.constant dense<0.000000e+00> : vector<1x4xf32>
    %1 = vector.multi_reduction <add>, %0, %cst [2] : vector<1x4x256xf32> to vector<1x4xf32>
    %2 = vector.shape_cast %1 : vector<1x4xf32> to vector<1x4x1xf32>
    %3 = vector.shape_cast %2 : vector<1x4x1xf32> to vector<4x1xf32>
    %c0_2 = arith.constant 0 : index
    %c0_3 = arith.constant 0 : index
    %c0_4 = arith.constant 0 : index
    %4 = vector.load %arg3[%c0_2, %c0_3, %c0_4] : memref<1x4x256xf32, #tpu.memory_space<vmem>>, vector<1x4x256xf32>
    %cst_5 = arith.constant dense<0.000000e+00> : vector<1x4xf32>
    %5 = vector.multi_reduction <add>, %4, %cst_5 [2] : vector<1x4x256xf32> to vector<1x4xf32>
    %6 = vector.shape_cast %5 : vector<1x4xf32> to vector<1x4x1xf32>
    %7 = vector.shape_cast %6 : vector<1x4x1xf32> to vector<4x1xf32>
    %c0_6 = arith.constant 0 : index
    %8 = memref.load %arg1[%c0_6] : memref<3xf32, #tpu.memory_space<smem>>
    %c1 = arith.constant 1 : index
    %9 = memref.load %arg1[%c1] : memref<3xf32, #tpu.memory_space<smem>>
    %c2 = arith.constant 2 : index
    %10 = memref.load %arg1[%c2] : memref<3xf32, #tpu.memory_space<smem>>
    %11 = tpu.iota {dimensions = array<i32: 0>} : vector<4x4xi32>
    %12 = tpu.iota {dimensions = array<i32: 1>} : vector<4x4xi32>
    %13 = arith.cmpi eq, %11, %12 : vector<4x4xi32>
    %c1_i32 = arith.constant 1 : i32
    %14 = vector.broadcast %c1_i32 : i32 to vector<4x4xi32>
    %15 = arith.subi %12, %14 : vector<4x4xi32>
    %16 = arith.cmpi eq, %11, %15 : vector<4x4xi32>
    %cst_7 = arith.constant 0.000000e+00 : f32
    %17 = vector.broadcast %8 : f32 to vector<4x4xf32>
    %18 = vector.broadcast %cst_7 : f32 to vector<4x4xf32>
    %19 = arith.select %16, %17, %18 : vector<4x4xi1>, vector<4x4xf32>
    %cst_8 = arith.constant 0.000000e+00 : f32
    %20 = vector.broadcast %10 : f32 to vector<4x4xf32>
    %21 = vector.broadcast %cst_8 : f32 to vector<4x4xf32>
    %22 = arith.select %13, %20, %21 : vector<4x4xi1>, vector<4x4xf32>
    %23 = arith.addf %19, %22 : vector<4x4xf32>
    %cst_9 = arith.constant 0.000000e+00 : f32
    %24 = vector.broadcast %8 : f32 to vector<4x4xf32>
    %25 = vector.broadcast %cst_9 : f32 to vector<4x4xf32>
    %26 = arith.select %13, %24, %25 : vector<4x4xi1>, vector<4x4xf32>
    %c1_i32_10 = arith.constant 1 : i32
    %27 = vector.broadcast %c1_i32_10 : i32 to vector<4x4xi32>
    %28 = arith.addi %12, %27 : vector<4x4xi32>
    %29 = arith.cmpi eq, %11, %28 : vector<4x4xi32>
    %cst_11 = arith.constant 0.000000e+00 : f32
    %30 = vector.broadcast %10 : f32 to vector<4x4xf32>
    %31 = vector.broadcast %cst_11 : f32 to vector<4x4xf32>
    %32 = arith.select %29, %30, %31 : vector<4x4xi1>, vector<4x4xf32>
    %33 = arith.addf %26, %32 : vector<4x4xf32>
    %cst_12 = arith.constant 0.000000e+00 : f32
    %34 = vector.broadcast %9 : f32 to vector<4x4xf32>
    %35 = vector.broadcast %cst_12 : f32 to vector<4x4xf32>
    %36 = arith.select %13, %34, %35 : vector<4x4xi1>, vector<4x4xf32>
    %37 = vector.broadcast %3 : vector<4x1xf32> to vector<4x4xf32>
    %38 = arith.mulf %37, %36 : vector<4x4xf32>
    %39 = vector.broadcast %7 : vector<4x1xf32> to vector<4x4xf32>
    %40 = arith.mulf %39, %23 : vector<4x4xf32>
    %41 = arith.addf %38, %40 : vector<4x4xf32>
    %cst_13 = arith.constant dense<0.000000e+00> : vector<4xf32>
    %42 = vector.multi_reduction <add>, %41, %cst_13 [0] : vector<4x4xf32> to vector<4xf32>
    %43 = vector.shape_cast %42 : vector<4xf32> to vector<1x4xf32>
    %44 = vector.broadcast %3 : vector<4x1xf32> to vector<4x4xf32>
    %45 = arith.mulf %44, %33 : vector<4x4xf32>
    %46 = vector.broadcast %7 : vector<4x1xf32> to vector<4x4xf32>
    %47 = arith.mulf %46, %36 : vector<4x4xf32>
    %48 = arith.addf %45, %47 : vector<4x4xf32>
    %cst_14 = arith.constant dense<0.000000e+00> : vector<4xf32>
    %49 = vector.multi_reduction <add>, %48, %cst_14 [0] : vector<4x4xf32> to vector<4xf32>
    %50 = vector.shape_cast %49 : vector<4xf32> to vector<1x4xf32>
    %51 = arith.negf %43 : vector<1x4xf32>
    %52 = math.exp %51 : vector<1x4xf32>
    %cst_15 = arith.constant 1.000000e+00 : f32
    %53 = vector.broadcast %cst_15 : f32 to vector<1x4xf32>
    %54 = arith.addf %53, %52 : vector<1x4xf32>
    %55 = arith.divf %53, %54 : vector<1x4xf32>
    %56 = arith.negf %50 : vector<1x4xf32>
    %57 = math.exp %56 : vector<1x4xf32>
    %cst_16 = arith.constant 1.000000e+00 : f32
    %58 = vector.broadcast %cst_16 : f32 to vector<1x4xf32>
    %59 = arith.addf %58, %57 : vector<1x4xf32>
    %60 = arith.divf %58, %59 : vector<1x4xf32>
    %cst_17 = arith.constant 1.000000e+00 : f32
    %cst_18 = arith.constant 0.000000e+00 : f32
    %61 = vector.broadcast %cst_17 : f32 to vector<4x4xf32>
    %62 = vector.broadcast %cst_18 : f32 to vector<4x4xf32>
    %63 = arith.select %13, %61, %62 : vector<4x4xi1>, vector<4x4xf32>
    %64 = vector.broadcast %55 : vector<1x4xf32> to vector<4x4xf32>
    %65 = arith.mulf %64, %63 : vector<4x4xf32>
    %cst_19 = arith.constant dense<0.000000e+00> : vector<4xf32>
    %66 = vector.multi_reduction <add>, %65, %cst_19 [1] : vector<4x4xf32> to vector<4xf32>
    %67 = vector.shape_cast %66 : vector<4xf32> to vector<4x1xf32>
    %68 = vector.broadcast %60 : vector<1x4xf32> to vector<4x4xf32>
    %69 = arith.mulf %68, %63 : vector<4x4xf32>
    %cst_20 = arith.constant dense<0.000000e+00> : vector<4xf32>
    %70 = vector.multi_reduction <add>, %69, %cst_20 [1] : vector<4x4xf32> to vector<4xf32>
    %71 = vector.shape_cast %70 : vector<4xf32> to vector<4x1xf32>
    %c0_21 = arith.constant 0 : index
    %c0_22 = arith.constant 0 : index
    %c0_23 = arith.constant 0 : index
    %72 = vector.load %arg2[%c0_21, %c0_22, %c0_23] : memref<1x4x256xf32, #tpu.memory_space<vmem>>, vector<1x4x256xf32>
    %73 = vector.shape_cast %67 : vector<4x1xf32> to vector<1x4x1xf32>
    %74 = vector.broadcast %73 : vector<1x4x1xf32> to vector<1x4x256xf32>
    %75 = arith.mulf %72, %74 : vector<1x4x256xf32>
    %c0_24 = arith.constant 0 : index
    %c0_25 = arith.constant 0 : index
    %c0_26 = arith.constant 0 : index
    %76 = vector.load %arg4[%c0_24, %c0_25, %c0_26] : memref<1x4x256xf32, #tpu.memory_space<vmem>>, vector<1x4x256xf32>
    tpu.vector_store %arg4[%c0_24, %c0_25, %c0_26], %75 {strides = array<i32>} : memref<1x4x256xf32, #tpu.memory_space<vmem>>, vector<1x4x256xf32>,
    %c0_27 = arith.constant 0 : index
    %c0_28 = arith.constant 0 : index
    %c0_29 = arith.constant 0 : index
    %77 = vector.load %arg3[%c0_27, %c0_28, %c0_29] : memref<1x4x256xf32, #tpu.memory_space<vmem>>, vector<1x4x256xf32>
    %78 = vector.shape_cast %71 : vector<4x1xf32> to vector<1x4x1xf32>
    %79 = vector.broadcast %78 : vector<1x4x1xf32> to vector<1x4x256xf32>
    %80 = arith.mulf %77, %79 : vector<1x4x256xf32>
    %c0_30 = arith.constant 0 : index
    %c0_31 = arith.constant 0 : index
    %c0_32 = arith.constant 0 : index
    %81 = vector.load %arg5[%c0_30, %c0_31, %c0_32] : memref<1x4x256xf32, #tpu.memory_space<vmem>>, vector<1x4x256xf32>
    tpu.vector_store %arg5[%c0_30, %c0_31, %c0_32], %80 {strides = array<i32>} : memref<1x4x256xf32, #tpu.memory_space<vmem>>, vector<1x4x256xf32>,
    return
  }
  func.func @transform_0(%arg0: i32, %arg1: memref<3xf32, #tpu.memory_space<smem>>) -> (i32, i32, i32) {
    %c0_i32 = arith.constant 0 : i32
    %c0_i32_0 = arith.constant 0 : i32
    %c0_i32_1 = arith.constant 0 : i32
    return %arg0, %c0_i32, %c0_i32_0 : i32, i32, i32
  }
  func.func @transform_1(%arg0: i32, %arg1: memref<3xf32, #tpu.memory_space<smem>>) -> (i32, i32, i32) {
    %c0_i32 = arith.constant 0 : i32
    %c0_i32_0 = arith.constant 0 : i32
    %c0_i32_1 = arith.constant 0 : i32
    return %arg0, %c0_i32, %c0_i32_0 : i32, i32, i32
  }
  func.func @transform_2(%arg0: i32, %arg1: memref<3xf32, #tpu.memory_space<smem>>) -> (i32, i32, i32) {
    %c0_i32 = arith.constant 0 : i32
    %c0_i32_0 = arith.constant 0 : i32
    %c0_i32_1 = arith.constant 0 : i32
    return %arg0, %c0_i32, %c0_i32_0 : i32, i32, i32
  }
  func.func @transform_3(%arg0: i32, %arg1: memref<3xf32, #tpu.memory_space<smem>>) -> (i32, i32, i32) {
    %c0_i32 = arith.constant 0 : i32
    %c0_i32_0 = arith.constant 0 : i32
    %c0_i32_1 = arith.constant 0 : i32
    return %arg0, %c0_i32, %c0_i32_0 : i32, i32, i32
  }
}

</mosaic_0001>

<llo_original>
// kernel: tpu_custom_call.1
$region0: #{tpu_custom_call.1}
  #allocation0 [shape = 'u32[]', space=smem, size = 0x4, offset = 0x4, fixed_abs, tag = 'smem constant byte address 0x4 - core index']
  #allocation1 [shape = 'u32[144,128]{1,0:T(1,128)}', space=vmem, size = 0x12000, scoped, tag = 'internal scratch']
  #allocation2 [shape = 's32[1]{0}', space=sflag, size = 0x4, scoped, tag = 'scoped memory for tpu_custom_call.1']
  #allocation3 [shape = 'u8[512]{0}', space=smem, size = 0x200, scoped, tag = 'prefetched SMEM operand 0']
  %s0 = inlined_call_operand.hbm [shape: f32[3], index: 0, kind: input, shape index: {}]
  %s1 = inlined_call_operand.hbm [shape: f32[2,4,256], index: 1, kind: input, shape index: {}]
  %s2 = inlined_call_operand.hbm [shape: f32[2,4,256], index: 2, kind: input, shape index: {}]
  %s3 = inlined_call_operand.hbm [shape: f32[2,4,256], index: 3, kind: output, shape index: {0}]
  %s4 = inlined_call_operand.hbm [shape: f32[2,4,256], index: 4, kind: output, shape index: {1}]
  %5 = xla_tuple %s3, %s4
  %s6 = sld [smem:[#allocation0]]
  $region57: #{tpu_custom_call.1} parent=0
    _
  %s8 = ssub.s32 1, %s6
  %s9 = scalar_select 0, %s8, %s6
  %11 = dma.hbm_to_smem %s0, 16, [#allocation3], [#allocation2]
  %12 = dma.done [#allocation2], 16
  %13 = sfence
  $region1: #{tpu_custom_call.1} parent=0
    #allocation4 [shape = 'u8[8192]{0}', space=vmem, size = 0x2000, scoped, tag = 'input window, operand 1']
    #allocation5 [shape = 's32[2]{0}', space=sflag, size = 0x8, scoped, tag = 'scoped memory for tpu_custom_call.1']
    #allocation6 [shape = 's32[2]{0}', space=sflag, size = 0x8, scoped, tag = 'scoped memory for tpu_custom_call.1']
    #allocation7 [shape = 'u8[8192]{0}', space=vmem, size = 0x2000, scoped, tag = 'input window, operand 2']
    #allocation8 [shape = 's32[2]{0}', space=sflag, size = 0x8, scoped, tag = 'scoped memory for tpu_custom_call.1']
    #allocation9 [shape = 'u8[8192]{0}', space=vmem, size = 0x2000, scoped, tag = 'output window, operand 0']
    #allocation10 [shape = 'u8[8192]{0}', space=vmem, size = 0x2000, scoped, tag = 'output window, operand 1']
    #allocation11 [shape = 's32[2]{0}', space=sflag, size = 0x8, scoped, tag = 'scoped memory for tpu_custom_call.1']
    %14 = vsyncpa [#allocation5], 0
    %s15 = scalar_lea.sflag [#allocation5], 1
    %16 = vsyncpa %s15, 0
    %17 = vsyncpa [#allocation8], 0
    %s18 = scalar_lea.sflag [#allocation8], 1
    %19 = vsyncpa %s18, 0
    %20 = vsyncpa [#allocation6], 0
    %s21 = scalar_lea.sflag [#allocation6], 1
    %22 = vsyncpa %s21, 0
    %23 = vsyncpa [#allocation11], 0
    %s24 = scalar_lea.sflag [#allocation11], 1
    %25 = vsyncpa %s24, 0
    loop: start=0, step=1, limit=4
    $region2: #{tpu_custom_call.1} parent=1 // loop_pre_header
      _
    $region3: #{tpu_custom_call.1} parent=1 // loop_header
      %s27 = sphi 0, %s31
      %p28 = scmp.ge.s32.totalorder %s27, 4
      %s37 = sphi 0, %s39
      %s40 = sphi 0, %s37
      %s41 = sphi 0, %s40
      %s57 = sphi 0, %s41
      %s63 = sphi 0, %s65
      %s66 = sphi 0, %s63
      %s67 = sphi 0, %s66
      %s83 = sphi 0, %s67
      %s89 = sphi 0, %s91
      %s92 = sphi 0, %s89
      %s93 = sphi 0, %s92
      %s109 = sphi 0, %s93
      %s115 = sphi 0, %s117
      %s118 = sphi 0, %s115
      %s119 = sphi 0, %s118
      %s135 = sphi 0, %s119
    $region4: #{tpu_custom_call.1} parent=1 // loop_header_branch
      %30 = sbr.rel (%p28) target = $region8
    $region5: #{tpu_custom_call.1} parent=1 // loop_body
      %s32 = ssub.s32 %s27, 1
      %s33 = ssub.s32 %s27, 2
      %s34 = sadd.s32 %s27, 1
      %s35 = ssub.s32 %s27, %s34
      %p36 = scmp.eq.s32.totalorder %s35, 0
      %s38 = sadd.s32 %s37, 1
      %s39 = scalar_select %p36, %s37, %s38
      %p42 = pneg %p36
      %p43 = scmp.eq.s32.totalorder %s27, 1
      %p44 = por %p42, %p43
      %p45 = scmp.ne.s32.totalorder %s37, %s40
      %p46 = scmp.eq.s32.totalorder %s27, 0
      %p47 = por %p45, %p46
      %p48 = scmp.ne.s32.totalorder %s37, %s40
      %p49 = scmp.eq.s32.totalorder %s32, 1
      %p50 = por %p48, %p49
      %p51 = scmp.ne.s32.totalorder %s40, %s41
      %p52 = scmp.eq.s32.totalorder %s32, 0
      %p53 = por %p51, %p52
      %p54 = scmp.ne.s32.totalorder %s40, %s41
      %p55 = scmp.eq.s32.totalorder %s33, 1
      %p56 = por %p54, %p55
      %p58 = scmp.ne.s32.totalorder %s41, %s57
      %p59 = scmp.eq.s32.totalorder %s33, 0
      %p60 = por %p58, %p59
      %s61 = ssub.s32 %s27, %s34
      %p62 = scmp.eq.s32.totalorder %s61, 0
      %s64 = sadd.s32 %s63, 1
      %s65 = scalar_select %p62, %s63, %s64
      %p68 = pneg %p62
      %p69 = scmp.eq.s32.totalorder %s27, 1
      %p70 = por %p68, %p69
      %p71 = scmp.ne.s32.totalorder %s63, %s66
      %p72 = scmp.eq.s32.totalorder %s27, 0
      %p73 = por %p71, %p72
      %p74 = scmp.ne.s32.totalorder %s63, %s66
      %p75 = scmp.eq.s32.totalorder %s32, 1
      %p76 = por %p74, %p75
      %p77 = scmp.ne.s32.totalorder %s66, %s67
      %p78 = scmp.eq.s32.totalorder %s32, 0
      %p79 = por %p77, %p78
      %p80 = scmp.ne.s32.totalorder %s66, %s67
      %p81 = scmp.eq.s32.totalorder %s33, 1
      %p82 = por %p80, %p81
      %p84 = scmp.ne.s32.totalorder %s67, %s83
      %p85 = scmp.eq.s32.totalorder %s33, 0
      %p86 = por %p84, %p85
      %s87 = ssub.s32 %s27, %s34
      %p88 = scmp.eq.s32.totalorder %s87, 0
      %s90 = sadd.s32 %s89, 1
      %s91 = scalar_select %p88, %s89, %s90
      %p94 = pneg %p88
      %p95 = scmp.eq.s32.totalorder %s27, 1
      %p96 = por %p94, %p95
      %p97 = scmp.ne.s32.totalorder %s89, %s92
      %p98 = scmp.eq.s32.totalorder %s27, 0
      %p99 = por %p97, %p98
      %p100 = scmp.ne.s32.totalorder %s89, %s92
      %p101 = scmp.eq.s32.totalorder %s32, 1
      %p102 = por %p100, %p101
      %p103 = scmp.ne.s32.totalorder %s92, %s93
      %p104 = scmp.eq.s32.totalorder %s32, 0
      %p105 = por %p103, %p104
      %p106 = scmp.ne.s32.totalorder %s92, %s93
      %p107 = scmp.eq.s32.totalorder %s33, 1
      %p108 = por %p106, %p107
      %p110 = scmp.ne.s32.totalorder %s93, %s109
      %p111 = scmp.eq.s32.totalorder %s33, 0
      %p112 = por %p110, %p111
      %s113 = ssub.s32 %s27, %s34
      %p114 = scmp.eq.s32.totalorder %s113, 0
      %s116 = sadd.s32 %s115, 1
      %s117 = scalar_select %p114, %s115, %s116
      %p120 = pneg %p114
      %p121 = scmp.eq.s32.totalorder %s27, 1
      %p122 = por %p120, %p121
      %p123 = scmp.ne.s32.totalorder %s115, %s118
      %p124 = scmp.eq.s32.totalorder %s27, 0
      %p125 = por %p123, %p124
      %p126 = scmp.ne.s32.totalorder %s115, %s118
      %p127 = scmp.eq.s32.totalorder %s32, 1
      %p128 = por %p126, %p127
      %p129 = scmp.ne.s32.totalorder %s118, %s119
      %p130 = scmp.eq.s32.totalorder %s32, 0
      %p131 = por %p129, %p130
      %p132 = scmp.ne.s32.totalorder %s118, %s119
      %p133 = scmp.eq.s32.totalorder %s33, 1
      %p134 = por %p132, %p133
      %p136 = scmp.ne.s32.totalorder %s119, %s135
      %p137 = scmp.eq.s32.totalorder %s33, 0
      %p138 = por %p136, %p137
      %p139 = scmp.le.s32.totalorder 1, %s27
      %p140 = scmp.lt.s32.totalorder %s27, 3
      %p141 = pnand %p139, %p140
      %p142 = pneg %p141
      // Predicated region
      $region9: #{tpu_custom_call.1} parent=5 // pred_check
        _
      $region10: #{tpu_custom_call.1} parent=5 // pred_check_branch
        %144 = sbr.rel (%p141) target = $region12
      $region11: #{tpu_custom_call.1} parent=5 // pred_region
        %s145 = ssub.s32 %s27, 1
      $region12: #{tpu_custom_call.1} parent=5 // pred_fallthru
        _
      %p146 = scmp.lt.s32.totalorder %s27, 2
      // Predicated region
      $region13: #{tpu_custom_call.1} parent=5 // pred_check
        %p147 = pneg %p146
      $region14: #{tpu_custom_call.1} parent=5 // pred_check_branch
        %149 = sbr.rel (%p147) target = $region16
      $region15: #{tpu_custom_call.1} parent=5 // pred_region
        // Predicated region
        $region17: #{tpu_custom_call.1} parent=15 // pred_check
          %p150 = pneg %p47
        $region18: #{tpu_custom_call.1} parent=15 // pred_check_branch
          %152 = sbr.rel (%p150) target = $region20
        $region19: #{tpu_custom_call.1} parent=15 // pred_region
          %s153 = sand.u32 %s37, 1
          %s154 = scalar_lea.sflag [#allocation5], %s153
          %s155 = sand.u32 %s37, 1
          %s156 = smul.addr %s155, 8
          %s157 = scalar_lea.vmem [#allocation4], %s156
          %s159 = ssub.s32 128, 128
          %160 = vsyncadd %s154, %s159
          %s161 = smul.addr %s27, 2
          %s162 = smul.addr %s161, 64
          %s163 = scalar_lea.hbm %s1, %s162
          %s165 = sshll.u32 %s157, 4
          %s166 = int_to_ptr.vmem [resolvable:$true] %s165
          %168 = dma.hbm_to_vmem [thread:$0]  %s163, 128, %s166, %s154
        $region20: #{tpu_custom_call.1} parent=15 // pred_fallthru
          _
        // Predicated region
        $region21: #{tpu_custom_call.1} parent=15 // pred_check
          %p169 = pneg %p73
        $region22: #{tpu_custom_call.1} parent=15 // pred_check_branch
          %171 = sbr.rel (%p169) target = $region24
        $region23: #{tpu_custom_call.1} parent=15 // pred_region
          %s172 = sand.u32 %s63, 1
          %s173 = scalar_lea.sflag [#allocation8], %s172
          %s174 = sand.u32 %s63, 1
          %s175 = smul.addr %s174, 8
          %s176 = scalar_lea.vmem [#allocation7], %s175
          %s178 = ssub.s32 128, 128
          %179 = vsyncadd %s173, %s178
          %s180 = smul.addr %s27, 2
          %s181 = smul.addr %s180, 64
          %s182 = scalar_lea.hbm %s2, %s181
          %s184 = sshll.u32 %s176, 4
          %s185 = int_to_ptr.vmem [resolvable:$true] %s184
          %187 = dma.hbm_to_vmem [thread:$0]  %s182, 128, %s185, %s173
        $region24: #{tpu_custom_call.1} parent=15 // pred_fallthru
          _
      $region16: #{tpu_custom_call.1} parent=5 // pred_fallthru
        _
      %p188 = scmp.le.s32.totalorder 1, %s27
      %p189 = scmp.lt.s32.totalorder %s27, 3
      %p190 = pnand %p188, %p189
      %p191 = pneg %p190
      // Predicated region
      $region25: #{tpu_custom_call.1} parent=5 // pred_check
        _
      $region26: #{tpu_custom_call.1} parent=5 // pred_check_branch
        %193 = sbr.rel (%p190) target = $region28
      $region27: #{tpu_custom_call.1} parent=5 // pred_region
        %s194 = ssub.s32 %s27, 1
        %s195 = sand.u32 %s40, 1
        %s196 = scalar_lea.sflag [#allocation5], %s195
        %s197 = sand.u32 %s40, 1
        %s198 = smul.addr %s197, 8
        %s199 = scalar_lea.vmem [#allocation4], %s198
        // Predicated region
        $region29: #{tpu_custom_call.1} parent=27 // pred_check
          %p200 = pneg %p53
        $region30: #{tpu_custom_call.1} parent=27 // pred_check_branch
          %202 = sbr.rel (%p200) target = $region32
        $region31: #{tpu_custom_call.1} parent=27 // pred_region
          %203 = dma.done %s196, 128
        $region32: #{tpu_custom_call.1} parent=27 // pred_fallthru
          _
        %s204 = sand.u32 %s66, 1
        %s205 = scalar_lea.sflag [#allocation8], %s204
        %s206 = sand.u32 %s66, 1
        %s207 = smul.addr %s206, 8
        %s208 = scalar_lea.vmem [#allocation7], %s207
        // Predicated region
        $region33: #{tpu_custom_call.1} parent=27 // pred_check
          %p209 = pneg %p79
        $region34: #{tpu_custom_call.1} parent=27 // pred_check_branch
          %211 = sbr.rel (%p209) target = $region36
        $region35: #{tpu_custom_call.1} parent=27 // pred_region
          %212 = dma.done %s205, 128
        $region36: #{tpu_custom_call.1} parent=27 // pred_fallthru
          _
        %s213 = sand.u32 %s40, 1
        %s214 = scalar_lea.sflag [#allocation5], %s213
        %s215 = sand.u32 %s40, 1
        %s216 = smul.addr %s215, 8
        %s217 = scalar_lea.vmem [#allocation4], %s216
        %p218 = pneg %p53
        %p219 = pneg %p50
        %s220 = sand.u32 %s66, 1
        %s221 = scalar_lea.sflag [#allocation8], %s220
        %s222 = sand.u32 %s66, 1
        %s223 = smul.addr %s222, 8
        %s224 = scalar_lea.vmem [#allocation7], %s223
        %p225 = pneg %p79
        %p226 = pneg %p76
        %p227 = pneg %p105
        %p228 = pneg %p102
        %s229 = sand.u32 %s92, 1
        %s230 = scalar_lea.sflag [#allocation6], %s229
        %s231 = sand.u32 %s92, 1
        %s232 = smul.addr %s231, 8
        %s233 = scalar_lea.vmem [#allocation9], %s232
        %p234 = pneg %p131
        %p235 = pneg %p128
        %s236 = sand.u32 %s118, 1
        %s237 = scalar_lea.sflag [#allocation11], %s236
        %s238 = sand.u32 %s118, 1
        %s239 = smul.addr %s238, 8
        %s240 = scalar_lea.vmem [#allocation10], %s239
        %v241 = vld [vmem:[%s199] sm:$0xff]
        %v243 = vcombine.high %v241, %v241
        %vm245 = vcmask 1043456
        %v246 = vsel %vm245, %v241, 0.0
        %v247 = vsel %vm245, %v243, 0.0
        %v248 = vadd.f32 %v246, %v247
        %249 = vadd.xlane.f32.xlu0 %v248
        %v250 = vpop.xlane.xlu0 %249
        %v251 = vld [vmem:[%s208] sm:$0xff]
        %v253 = vcombine.high %v251, %v251
        %v255 = vsel %vm245, %v251, 0.0
        %v256 = vsel %vm245, %v253, 0.0
        %v257 = vadd.f32 %v255, %v256
        %258 = vadd.xlane.f32.xlu0 %v257
        %v259 = vpop.xlane.xlu0 %258
        %s260 = sld [smem:[#allocation3]]
        %s261 = sld [smem:[#allocation3 + $0x1]]
        %s262 = sld [smem:[#allocation3 + $0x2]]
        %v263 = vlaneseq
        %v264 = vshrl.u32 %v263, 7
        %v265 = vlaneseq
        %v266 = vand.u32 %v265, 127
        %vm267 = vcmp.eq.s32.totalorder %v264, %v266
        %v268 = vsub.s32 %v266, 1
        %vm269 = vcmp.eq.s32.totalorder %v264, %v268
        %v270 = vstv %s260
        %v271 = vsel %vm269, %v270, 0.0
        %v272 = vstv %s262
        %v273 = vsel %vm267, %v272, 0.0
        %v274 = vadd.f32 %v271, %v273
        %v275 = vsel %vm267, %v270, 0.0
        %v276 = vadd.s32 %v266, 1
        %vm277 = vcmp.eq.s32.totalorder %v264, %v276
        %v278 = vsel %vm277, %v272, 0.0
        %v279 = vadd.f32 %v275, %v278
        %v280 = vstv %s261
        %v281 = vsel %vm267, %v280, 0.0
        %v282 = vmul.f32 %v250, %v281
        %v283 = vmul.f32 %v259, %v274
        %v284 = vadd.f32 %v282, %v283
        %vm285 = vcmask 27648
        %v286 = vsel %vm285, %v284, 0.0
        %v287 = vrot.slane %v286, 4
        %v288 = vadd.f32 %v286, %v287
        %v289 = vrot.slane %v288, 2
        %v290 = vadd.f32 %v288, %v289
        %v291 = vrot.slane %v290, 1
        %v292 = vadd.f32 %v290, %v291
        %v293 = vmul.f32 %v250, %v279
        %v294 = vmul.f32 %v259, %v281
        %v295 = vadd.f32 %v293, %v294
        %v296 = vsel %vm285, %v295, 0.0
        %v297 = vrot.slane %v296, 4
        %v298 = vadd.f32 %v296, %v297
        %v299 = vrot.slane %v298, 2
        %v300 = vadd.f32 %v298, %v299
        %v301 = vrot.slane %v300, 1
        %v302 = vadd.f32 %v300, %v301
        %v303 = vxor.u32 %v292, 2147483648
        %v304 = vmul.f32 %v303, 1.442695
        %v305 = vpow.pop %v304
        %v306 = vadd.f32 %v305, 1.0
        %v307 = vrcp.pop %v306
        %v308 = vmul.f32 1.0, %v307
        %v309 = vxor.u32 %v302, 2147483648
        %v310 = vmul.f32 %v309, 1.442695
        %v311 = vpow.pop %v310
        %v312 = vadd.f32 %v311, 1.0
        %v313 = vrcp.pop %v312
        %v314 = vmul.f32 1.0, %v313
        %v315 = vsel %vm267, 1.0, 0.0
        %v316 = vmul.f32 %v308, %v315
        %v317 = vsel %vm285, %v316, 0.0
        %318 = vadd.xlane.f32.xlu0 %v317
        %v319 = vpop.xlane.xlu0 %318
        %v320 = vmul.f32 %v314, %v315
        %v321 = vsel %vm285, %v320, 0.0
        %322 = vadd.xlane.f32.xlu0 %v321
        %v323 = vpop.xlane.xlu0 %322
        %v326 = vunpack.c.l.s4 839922192
        %v327 = vunpack.c.0.s8 %v326
        %v328 = vlaneseq
        %v329 = vshrl.u32 %v328, 7
        %v330 = vsub.s32 %v327, %v329
        %v331 = vrot.slane %v319, %v330
        %v333 = vmul.f32 %v241, %v331
        %334 = vst [vmem:[%s233] sm:$0xff] %v333
        %v335 = vld [vmem:[%s208] sm:$0xff]
        %v338 = vunpack.c.l.s4 839922192
        %v339 = vunpack.c.0.s8 %v338
        %v340 = vlaneseq
        %v341 = vshrl.u32 %v340, 7
        %v342 = vsub.s32 %v339, %v341
        %v343 = vrot.slane %v323, %v342
        %v345 = vmul.f32 %v335, %v343
        %346 = vst [vmem:[%s240] sm:$0xff] %v345
        %s347 = sand.u32 %s92, 1
        %s348 = scalar_lea.sflag [#allocation6], %s347
        %s349 = sand.u32 %s92, 1
        %s350 = smul.addr %s349, 8
        %s351 = scalar_lea.vmem [#allocation9], %s350
        %s352 = sand.u32 %s118, 1
        %s353 = scalar_lea.sflag [#allocation11], %s352
        %s354 = sand.u32 %s118, 1
        %s355 = smul.addr %s354, 8
        %s356 = scalar_lea.vmem [#allocation10], %s355
        // Predicated region
        $region37: #{tpu_custom_call.1} parent=27 // pred_check
          %p357 = pneg %p102
        $region38: #{tpu_custom_call.1} parent=27 // pred_check_branch
          %359 = sbr.rel (%p357) target = $region40
        $region39: #{tpu_custom_call.1} parent=27 // pred_region
          %s361 = ssub.s32 128, 128
          %362 = vsyncadd %s348, %s361
          %s363 = smul.addr %s32, 2
          %s364 = smul.addr %s363, 64
          %s365 = scalar_lea.hbm %s3, %s364
          %s367 = sshll.u32 %s351, 4
          %s368 = int_to_ptr.vmem [resolvable:$true] %s367
          %370 = dma.vmem_to_hbm [thread:$0]  %s368, 128, %s365, %s348
        $region40: #{tpu_custom_call.1} parent=27 // pred_fallthru
          _
        // Predicated region
        $region41: #{tpu_custom_call.1} parent=27 // pred_check
          %p371 = pneg %p128
        $region42: #{tpu_custom_call.1} parent=27 // pred_check_branch
          %373 = sbr.rel (%p371) target = $region44
        $region43: #{tpu_custom_call.1} parent=27 // pred_region
          %s375 = ssub.s32 128, 128
          %376 = vsyncadd %s353, %s375
          %s377 = smul.addr %s32, 2
          %s378 = smul.addr %s377, 64
          %s379 = scalar_lea.hbm %s4, %s378
          %s381 = sshll.u32 %s356, 4
          %s382 = int_to_ptr.vmem [resolvable:$true] %s381
          %384 = dma.vmem_to_hbm [thread:$0]  %s382, 128, %s379, %s353
        $region44: #{tpu_custom_call.1} parent=27 // pred_fallthru
          _
      $region28: #{tpu_custom_call.1} parent=5 // pred_fallthru
        _
      %p385 = scmp.le.s32.totalorder 2, %s27
      // Predicated region
      $region45: #{tpu_custom_call.1} parent=5 // pred_check
        %p386 = pneg %p385
      $region46: #{tpu_custom_call.1} parent=5 // pred_check_branch
        %388 = sbr.rel (%p386) target = $region48
      $region47: #{tpu_custom_call.1} parent=5 // pred_region
        %s389 = ssub.s32 %s27, 2
        // Predicated region
        $region49: #{tpu_custom_call.1} parent=47 // pred_check
          %p390 = pneg %p108
        $region50: #{tpu_custom_call.1} parent=47 // pred_check_branch
          %392 = sbr.rel (%p390) target = $region52
        $region51: #{tpu_custom_call.1} parent=47 // pred_region
          %s393 = sand.u32 %s93, 1
          %s394 = scalar_lea.sflag [#allocation6], %s393
          %s395 = sand.u32 %s93, 1
          %s396 = smul.addr %s395, 8
          %s397 = scalar_lea.vmem [#allocation9], %s396
          %398 = dma.done %s394, 128
        $region52: #{tpu_custom_call.1} parent=47 // pred_fallthru
          _
        // Predicated region
        $region53: #{tpu_custom_call.1} parent=47 // pred_check
          %p399 = pneg %p134
        $region54: #{tpu_custom_call.1} parent=47 // pred_check_branch
          %401 = sbr.rel (%p399) target = $region56
        $region55: #{tpu_custom_call.1} parent=47 // pred_region
          %s402 = sand.u32 %s119, 1
          %s403 = scalar_lea.sflag [#allocation11], %s402
          %s404 = sand.u32 %s119, 1
          %s405 = smul.addr %s404, 8
          %s406 = scalar_lea.vmem [#allocation10], %s405
          %407 = dma.done %s403, 128
        $region56: #{tpu_custom_call.1} parent=47 // pred_fallthru
          _
      $region48: #{tpu_custom_call.1} parent=5 // pred_fallthru
        _
    $region6: #{tpu_custom_call.1} parent=1 // loop_footer
      %s31 = sadd.s32 1, %s27
    $region7: #{tpu_custom_call.1} parent=1 // loop_footer_branch
      %26 = sbr.rel target = $region3
    $region8: #{tpu_custom_call.1} parent=1 // loop_exit
      _
    %408 = vsyncpa [#allocation5], 1
    %s409 = scalar_lea.sflag [#allocation5], 1
    %410 = vsyncpa %s409, 1
    %411 = vsyncpa [#allocation8], 1
    %s412 = scalar_lea.sflag [#allocation8], 1
    %413 = vsyncpa %s412, 1
    %414 = vsyncpa [#allocation6], 1
    %s415 = scalar_lea.sflag [#allocation6], 1
    %416 = vsyncpa %s415, 1
    %417 = vsyncpa [#allocation11], 1
    %s418 = scalar_lea.sflag [#allocation11], 1
    %419 = vsyncpa %s418, 1

</llo_original>
